<compile_context>
chip_gen: v5e
topology: v5e:2x2
jax: 0.10.0
libtpu: 0.0.40
codegen_flags: <defaults>
</compile_context>

<pallas_src>
import jax
import jax.numpy as jnp
from jax.experimental import pallas as pl
from jax.experimental.pallas import tpu as pltpu

_MB = 1024 * 1024


def _round_up(a, b):
    return (a + b - 1) // b * b


def _detect_vmem_capacity_bytes():
    """Per-generation VMEM capacity (v5e/v6e: 128 MiB, v7x: 64 MiB per TC)."""
    try:
        info = pltpu.get_tpu_info()
        for attr in ("vmem_capacity_bytes", "vmem_size_bytes", "vmem_bytes"):
            val = getattr(info, attr, None)
            if val:
                return int(val)
    except Exception:
        pass
    return 64 * _MB  # conservative fallback: v7x per-TensorCore VMEM


def _pipeline_vmem_bytes(tm, ti, H, x_bytes):
    """Conservative VMEM estimate: double-buffered pipeline blocks, scratch,
    and the internal f32 k temporary of the first matmul (review item)."""
    db = 2  # pipeline double-buffering
    return (
        db * tm * H * x_bytes          # x block
        + db * tm * H * 4              # sigmoid(receptance) block (f32)
        + db * tm * H * x_bytes        # out block
        + db * tm * 128 * 4            # keep-mask block (lane-padded)
        + db * 8 * H * 4 * 3           # prev rows / (1-tmk) / value bias (sublane-padded)
        + db * H * ti * 2              # key weight block (bf16)
        + db * ti * H * 2              # value weight block (bf16)
        + db * 8 * ti * 4              # key bias block
        + tm * H * 4                   # f32 kv accumulator scratch
        + tm * H * 2                   # bf16 hoisted-xk scratch
        + tm * ti * 6                  # internal k temp (f32 result + bf16 staging)
    )


def _choose_tiles(T, H, I, x_bytes, tile_m, tile_i, budget):
    """Pick (tile_m, tile_i). Prefer full weight residency (tile_i = I) so the
    key/value weights are DMA'd once per kernel; otherwise stream the largest
    intermediate tile that fits the VMEM budget, shrinking tile_m last."""
    tm = 512 if tile_m is None else int(tile_m)          # review: >=512 (v6e/v7x), >=256 (v5e)
    tm = min(_round_up(tm, 8), _round_up(T, 8))
    i_full = _round_up(I, 128)

    if tile_i is not None:
        return tm, min(_round_up(int(tile_i), 128), i_full)

    while True:
        if _pipeline_vmem_bytes(tm, i_full, H, x_bytes) <= budget:
            return tm, i_full                             # full residency: ni == 1
        ti = i_full
        while ti > 128 and _pipeline_vmem_bytes(tm, ti, H, x_bytes) > budget:
            ti = _round_up(ti // 2, 128)
        if _pipeline_vmem_bytes(tm, ti, H, x_bytes) <= budget or tm <= 64:
            return tm, ti
        tm = max(64, _round_up(tm // 2, 8))


def rwkv_mlp_kernel(x_ref, prev_ref, keep_ref, tmk_ref,
                    kw_ref, kb_ref, vw_ref, vb_ref, sr_ref,
                    out_ref, acc_ref, xk_ref):
    j = pl.program_id(1)

    # --- hoisted per-token-tile work (runs once per i, not once per j) -------
    @pl.when(j == 0)
    def _():
        acc_ref[...] = jnp.zeros_like(acc_ref)
        x = x_ref[...].astype(jnp.float32)
        # One-token time shift: roll one row down along sublanes, patch row 0
        # with the carried last row of the previous token tile, zero sequence
        # starts / padding via the precomputed keep mask.
        shifted = pltpu.roll(x, shift=1, axis=0)
        row_ids = jax.lax.broadcasted_iota(jnp.int32, x.shape, 0)
        state = jnp.where(row_ids == 0, prev_ref[0].astype(jnp.float32), shifted)
        state = state * keep_ref[...]
        xk_ref[...] = (x + (state - x) * tmk_ref[...]).astype(jnp.bfloat16)

    # --- steady state: pure MXU + relu/square + f32 accumulate ---------------
    k = jnp.dot(xk_ref[...], kw_ref[...], preferred_element_type=jnp.float32)
    k = jnp.maximum(k + kb_ref[...], 0.0)
    k = k * k
    acc_ref[...] += jnp.dot(k.astype(jnp.bfloat16), vw_ref[...],
                            preferred_element_type=jnp.float32)

    # --- finalize: kv bias + multiply by precomputed sigmoid(receptance) ----
    @pl.when(j == pl.num_programs(1) - 1)
    def _():
        kv = acc_ref[...] + vb_ref[...]
        out_ref[...] = (sr_ref[...] * kv).astype(out_ref.dtype)


def rwkv_mlp(x, position_ids, params, *, tile_m=None, tile_i=None):
    """x: [T, H] (f32 or bf16), position_ids: [T] int32.  Prefill path, TP=1.

    Tiles are auto-selected when not given: tile_m defaults to 512 on all
    generations (keeps the kernel MXU-bound when weights must be streamed);
    tile_i prefers full residency of the key/value weights when the detected
    VMEM capacity allows, otherwise streams the largest tile that fits.
    Like the PyTorch module, state[0] wraps to x[T-1]; it only survives if
    position_ids[0] != 0, which never happens for well-formed prefill.
    """
    orig_dtype = x.dtype
    T, H = x.shape
    I = params["key_w"].shape[1]
    x_bytes = x.dtype.itemsize

    cap = _detect_vmem_capacity_bytes()
    budget = max(min(int(cap * 0.8), cap - 16 * _MB), 24 * _MB)
    tm, ti = _choose_tiles(T, H, I, x_bytes, tile_m, tile_i, budget)

    Tp = _round_up(T, tm)
    Ip = _round_up(I, ti)
    nm = Tp // tm
    ni = Ip // ti

    f32 = jnp.float32
    x32 = x.astype(f32)

    # ---- receptance branch in plain XLA (review: keep the H x H weight out
    # of the kernel's VMEM budget; this GEMM is small vs key/value and
    # overlaps with the pallas_call). ----------------------------------------
    keep = (position_ids != 0).astype(f32)[:, None]                  # (T, 1)
    state = jnp.concatenate([x32[-1:], x32[:-1]], axis=0) * keep     # torch-style wrap
    xr = x32 + (state - x32) * (1.0 - params["time_mix_receptance"].astype(f32))
    rr = jnp.dot(xr.astype(jnp.bfloat16),
                 params["receptance_w"].astype(jnp.bfloat16),
                 preferred_element_type=f32) + params["receptance_b"].astype(f32)
    sig_rr = jax.nn.sigmoid(rr)                                      # (T, H) f32

    # ---- pad token / intermediate dims (inert padding: keep=0 rows give
    # state=0, padded intermediate cols give relu(0)^2 = 0 and zero vw rows,
    # padded tokens are sliced off). ------------------------------------------
    x_p = jnp.pad(x, ((0, Tp - T), (0, 0)))
    keep_p = jnp.pad(keep, ((0, Tp - T), (0, 0)))
    sig_rr_p = jnp.pad(sig_rr, ((0, Tp - T), (0, 0)))

    # Per-tile carry row: row 0 of token tile i needs x[i*tm - 1]
    # (wraps to x[T-1] at i == 0, matching torch negative indexing).
    prev_idx = jnp.arange(nm, dtype=jnp.int32) * tm - 1
    prev_idx = jnp.where(prev_idx < 0, T - 1, prev_idx)
    prev_rows = x_p[prev_idx][:, None, :]                            # (nm, 1, H)

    # Weights -> bf16 for MXU throughput; biases / accumulation stay f32.
    kw = jnp.pad(params["key_w"], ((0, 0), (0, Ip - I))).astype(jnp.bfloat16)
    kb = jnp.pad(params["key_b"], ((0, 0), (0, Ip - I))).astype(f32)
    vw = jnp.pad(params["value_w"], ((0, Ip - I), (0, 0))).astype(jnp.bfloat16)
    vb = params["value_b"].astype(f32)
    tmk = (1.0 - params["time_mix_key"]).astype(f32)                 # folded (1 - mix)

    need = _pipeline_vmem_bytes(tm, ti, H, x_bytes)
    vmem_limit = int(min(max(need * 5 // 4, 32 * _MB), max(cap - 8 * _MB, 32 * _MB)))

    out_p = pl.pallas_call(
        rwkv_mlp_kernel,
        out_shape=jax.ShapeDtypeStruct((Tp, H), orig_dtype),
        grid_spec=pltpu.PrefetchScalarGridSpec(
            num_scalar_prefetch=0,
            grid=(nm, ni),
            in_specs=[
                pl.BlockSpec((tm, H), lambda i, j: (i, 0)),       # x
                pl.BlockSpec((1, 1, H), lambda i, j: (i, 0, 0)),  # carry rows
                pl.BlockSpec((tm, 1), lambda i, j: (i, 0)),       # keep mask (f32)
                pl.BlockSpec((1, H), lambda i, j: (0, 0)),        # 1 - time_mix_key
                pl.BlockSpec((H, ti), lambda i, j: (0, j)),       # key weight [H, I]
                pl.BlockSpec((1, ti), lambda i, j: (0, j)),       # key bias
                pl.BlockSpec((ti, H), lambda i, j: (j, 0)),       # value weight [I, H]
                pl.BlockSpec((1, H), lambda i, j: (0, 0)),        # value bias
                pl.BlockSpec((tm, H), lambda i, j: (i, 0)),       # sigmoid(receptance)
            ],
            out_specs=pl.BlockSpec((tm, H), lambda i, j: (i, 0)),
            scratch_shapes=[
                pltpu.VMEM((tm, H), jnp.float32),    # kv accumulator
                pltpu.VMEM((tm, H), jnp.bfloat16),   # hoisted time-mixed xk
            ],
        ),
        compiler_params=pltpu.CompilerParams(
            dimension_semantics=("parallel", "arbitrary"),
            vmem_limit_bytes=vmem_limit,
        ),
    )(x_p, prev_rows, keep_p, tmk, kw, kb, vw, vb, sig_rr_p)

    return out_p[:T]


def rwkv_mlp_reference(x, position_ids, params):
    """Pure-JAX f32 reference mirroring the PyTorch forward (prefill, TP=1)."""
    x = x.astype(jnp.float32)
    T = x.shape[0]
    ott = jnp.arange(T) - 1
    state = x[ott]
    state = jnp.where((position_ids == 0)[:, None], 0.0, state)
    xx = state - x
    xk = x + xx * (1.0 - params["time_mix_key"])
    xr = x + xx * (1.0 - params["time_mix_receptance"])
    k = jnp.maximum(xk @ params["key_w"] + params["key_b"], 0.0) ** 2
    kv = k @ params["value_w"] + params["value_b"]
    rr = xr @ params["receptance_w"] + params["receptance_b"]
    return jax.nn.sigmoid(rr) * kv


def init_params(key, hidden_size, intermediate_size):
    ks = jax.random.split(key, 8)
    s = 0.05
    return {
        # nn.Parameter(torch.zeros(1,1,H)) in the module; random values here so
        # the test exercises the time-mixing math.
        "time_mix_key": jax.random.uniform(ks[0], (1, hidden_size), jnp.float32),
        "time_mix_receptance": jax.random.uniform(ks[1], (1, hidden_size), jnp.float32),
        "key_w": s * jax.random.normal(ks[2], (hidden_size, intermediate_size), jnp.float32),
        "key_b": s * jax.random.normal(ks[3], (1, intermediate_size), jnp.float32),
        "value_w": s * jax.random.normal(ks[4], (intermediate_size, hidden_size), jnp.float32),
        "value_b": s * jax.random.normal(ks[5], (1, hidden_size), jnp.float32),
        "receptance_w": s * jax.random.normal(ks[6], (hidden_size, hidden_size), jnp.float32),
        "receptance_b": s * jax.random.normal(ks[7], (1, hidden_size), jnp.float32),
    }


if __name__ == "__main__":
    HIDDEN = 32
    INTERMEDIATE = 256
    SEQ = 8            # two sequences of length 8 packed token-major
    T = 2 * SEQ

    key = jax.random.PRNGKey(0)
    kx, kp = jax.random.split(key)
    x = jax.random.normal(kx, (T, HIDDEN), jnp.float32)
    position_ids = jnp.concatenate(
        [jnp.arange(SEQ, dtype=jnp.int32), jnp.arange(SEQ, dtype=jnp.int32)])
    params = init_params(kp, HIDDEN, INTERMEDIATE)

    # TODO(synk): decode-path kv_cache slot_mapping read/write and the TP
    # all_gather collectives are paged-cache side effects; only the prefill
    # compute path is implemented here.

    ref = rwkv_mlp_reference(x, position_ids, params)

    # 1) small explicit tiles: exercises the 2x2 grid (multi-tile carry row +
    #    intermediate-dim accumulation loop).
    out_tiled = jax.block_until_ready(
        rwkv_mlp(x, position_ids, params, tile_m=8, tile_i=128))
    # 2) auto tiles: exercises the adaptive full-weight-residency path (ni=1).
    out_auto = jax.block_until_ready(rwkv_mlp(x, position_ids, params))

    assert out_tiled.shape == (T, HIDDEN) and out_auto.shape == (T, HIDDEN)
    # Kernel uses bf16 MXU operands with f32 accumulation -> loose-ish tol.
    assert jnp.allclose(out_tiled, ref, atol=5e-3, rtol=5e-2), "tiled mismatch vs reference"
    assert jnp.allclose(out_auto, ref, atol=5e-3, rtol=5e-2), "auto-tile mismatch vs reference"

    print("KERNEL_OK")
</pallas_src>

<mosaic_0001>
module attributes {stable_mosaic.version = 11 : i64} {
  func.func @rwkv_mlp_kernel(%arg0: i32, %arg1: i32, %arg2: memref<8x32xf32, #tpu.memory_space<vmem>>, %arg3: memref<1x1x32xf32, #tpu.memory_space<vmem>>, %arg4: memref<8x1xf32, #tpu.memory_space<vmem>>, %arg5: memref<1x32xf32, #tpu.memory_space<vmem>>, %arg6: memref<32x128xbf16, #tpu.memory_space<vmem>>, %arg7: memref<1x128xf32, #tpu.memory_space<vmem>>, %arg8: memref<128x32xbf16, #tpu.memory_space<vmem>>, %arg9: memref<1x32xf32, #tpu.memory_space<vmem>>, %arg10: memref<8x32xf32, #tpu.memory_space<vmem>>, %arg11: memref<8x32xf32, #tpu.memory_space<vmem>>, %arg12: memref<8x32xf32, #tpu.memory_space<vmem>>, %arg13: memref<8x32xbf16, #tpu.memory_space<vmem>>) attributes {dimension_semantics = [#tpu.dimension_semantics<parallel>, #tpu.dimension_semantics<arbitrary>], iteration_bounds = array<i64: 2, 2>, scalar_prefetch = 0 : i64, scratch_operands = 2 : i64, tpu.core_type = #tpu.core_type<tc>, window_params = [{transform_indices = @transform_0, window_bounds = array<i64: 8, 32>}, {transform_indices = @transform_1, window_bounds = array<i64: 1, 1, 32>}, {transform_indices = @transform_2, window_bounds = array<i64: 8, 1>}, {pipeline_mode = #tpu.pipeline_mode<synchronous>, transform_indices = @transform_3, window_bounds = array<i64: 1, 32>}, {transform_indices = @transform_4, window_bounds = array<i64: 32, 128>}, {transform_indices = @transform_5, window_bounds = array<i64: 1, 128>}, {transform_indices = @transform_6, window_bounds = array<i64: 128, 32>}, {pipeline_mode = #tpu.pipeline_mode<synchronous>, transform_indices = @transform_7, window_bounds = array<i64: 1, 32>}, {transform_indices = @transform_8, window_bounds = array<i64: 8, 32>}, {transform_indices = @transform_9, window_bounds = array<i64: 8, 32>}]} {
    %c0_i32 = arith.constant 0 : i32
    %0 = arith.cmpi eq, %arg1, %c0_i32 : i32
    %1 = arith.extui %0 : i1 to i32
    %c0_i32_0 = arith.constant 0 : i32
    %2 = arith.cmpi ne, %1, %c0_i32_0 : i32
    scf.if %2 {
      %cst_15 = arith.constant 0.000000e+00 : f32
      %21 = vector.broadcast %cst_15 : f32 to vector<8x32xf32>
      %c0_16 = arith.constant 0 : index
      %c0_17 = arith.constant 0 : index
      %22 = vector.load %arg12[%c0_16, %c0_17] : memref<8x32xf32, #tpu.memory_space<vmem>>, vector<8x32xf32>
      tpu.vector_store %arg12[%c0_16, %c0_17], %21 {strides = array<i32>} : memref<8x32xf32, #tpu.memory_space<vmem>>, vector<8x32xf32>,
      %c0_18 = arith.constant 0 : index
      %c0_19 = arith.constant 0 : index
      %23 = vector.load %arg2[%c0_18, %c0_19] : memref<8x32xf32, #tpu.memory_space<vmem>>, vector<8x32xf32>
      %c1_i32_20 = arith.constant 1 : i32
      %24 = tpu.dynamic_rotate %23 by %c1_i32_20 dim 0 : vector<8x32xf32>, i32 -> vector<8x32xf32>
      %25 = tpu.iota {dimensions = array<i32: 0>} : vector<8x32xi32>
      %c0_i32_21 = arith.constant 0 : i32
      %26 = vector.broadcast %c0_i32_21 : i32 to vector<8x32xi32>
      %27 = arith.cmpi eq, %25, %26 : vector<8x32xi32>
      %c0_22 = arith.constant 0 : index
      %c0_23 = arith.constant 0 : index
      %c0_24 = arith.constant 0 : index
      %28 = vector.load %arg3[%c0_22, %c0_23, %c0_24] : memref<1x1x32xf32, #tpu.memory_space<vmem>>, vector<1x1x32xf32>
      %29 = vector.shape_cast %28 : vector<1x1x32xf32> to vector<1x32xf32>
      %30 = vector.shape_cast %29 : vector<1x32xf32> to vector<1x32xf32>
      %31 = vector.broadcast %30 : vector<1x32xf32> to vector<8x32xf32>
      %32 = arith.select %27, %31, %24 : vector<8x32xi1>, vector<8x32xf32>
      %c0_25 = arith.constant 0 : index
      %c0_26 = arith.constant 0 : index
      %33 = vector.load %arg4[%c0_25, %c0_26] : memref<8x1xf32, #tpu.memory_space<vmem>>, vector<8x1xf32>
      %34 = vector.broadcast %33 : vector<8x1xf32> to vector<8x32xf32>
      %35 = arith.mulf %32, %34 : vector<8x32xf32>
      %36 = arith.subf %35, %23 : vector<8x32xf32>
      %c0_27 = arith.constant 0 : index
      %c0_28 = arith.constant 0 : index
      %37 = vector.load %arg5[%c0_27, %c0_28] : memref<1x32xf32, #tpu.memory_space<vmem>>, vector<1x32xf32>
      %38 = vector.broadcast %37 : vector<1x32xf32> to vector<8x32xf32>
      %39 = arith.mulf %36, %38 : vector<8x32xf32>
      %40 = arith.addf %23, %39 : vector<8x32xf32>
      %41 = arith.truncf %40 : vector<8x32xf32> to vector<8x32xbf16>
      %c0_29 = arith.constant 0 : index
      %c0_30 = arith.constant 0 : index
      %42 = vector.load %arg13[%c0_29, %c0_30] : memref<8x32xbf16, #tpu.memory_space<vmem>>, vector<8x32xbf16>
      tpu.vector_store %arg13[%c0_29, %c0_30], %41 {strides = array<i32>} : memref<8x32xbf16, #tpu.memory_space<vmem>>, vector<8x32xbf16>,
    } else {
    }
    %c0 = arith.constant 0 : index
    %c0_1 = arith.constant 0 : index
    %3 = vector.load %arg13[%c0, %c0_1] : memref<8x32xbf16, #tpu.memory_space<vmem>>, vector<8x32xbf16>
    %c0_2 = arith.constant 0 : index
    %c0_3 = arith.constant 0 : index
    %4 = vector.load %arg6[%c0_2, %c0_3] : memref<32x128xbf16, #tpu.memory_space<vmem>>, vector<32x128xbf16>
    %cst = arith.constant dense<0.000000e+00> : vector<8x128xf32>
    %5 = tpu.matmul %3, %4, %cst {dimension_numbers = #tpu.dot_dimension_numbers<[1], [0], [0], [1], [0, 0, 1, 1], [], []>} : vector<8x32xbf16>, vector<32x128xbf16>, vector<8x128xf32> -> vector<8x128xf32>
    %c0_4 = arith.constant 0 : index
    %c0_5 = arith.constant 0 : index
    %6 = vector.load %arg7[%c0_4, %c0_5] : memref<1x128xf32, #tpu.memory_space<vmem>>, vector<1x128xf32>
    %7 = vector.broadcast %6 : vector<1x128xf32> to vector<8x128xf32>
    %8 = arith.addf %5, %7 : vector<8x128xf32>
    %cst_6 = arith.constant 0.000000e+00 : f32
    %9 = vector.broadcast %cst_6 : f32 to vector<8x128xf32>
    %10 = arith.maximumf %8, %9 : vector<8x128xf32>
    %11 = arith.mulf %10, %10 : vector<8x128xf32>
    %c0_7 = arith.constant 0 : index
    %c0_8 = arith.constant 0 : index
    %12 = vector.load %arg12[%c0_7, %c0_8] : memref<8x32xf32, #tpu.memory_space<vmem>>, vector<8x32xf32>
    %13 = arith.truncf %11 : vector<8x128xf32> to vector<8x128xbf16>
    %c0_9 = arith.constant 0 : index
    %c0_10 = arith.constant 0 : index
    %14 = vector.load %arg8[%c0_9, %c0_10] : memref<128x32xbf16, #tpu.memory_space<vmem>>, vector<128x32xbf16>
    %cst_11 = arith.constant dense<0.000000e+00> : vector<8x32xf32>
    %15 = tpu.matmul %13, %14, %cst_11 {dimension_numbers = #tpu.dot_dimension_numbers<[1], [0], [0], [1], [0, 0, 1, 1], [], []>} : vector<8x128xbf16>, vector<128x32xbf16>, vector<8x32xf32> -> vector<8x32xf32>
    %16 = arith.addf %12, %15 : vector<8x32xf32>
    %c0_12 = arith.constant 0 : index
    %c0_13 = arith.constant 0 : index
    %17 = vector.load %arg12[%c0_12, %c0_13] : memref<8x32xf32, #tpu.memory_space<vmem>>, vector<8x32xf32>
    tpu.vector_store %arg12[%c0_12, %c0_13], %16 {strides = array<i32>} : memref<8x32xf32, #tpu.memory_space<vmem>>, vector<8x32xf32>,
    %c1_i32 = arith.constant 1 : i32
    %18 = arith.cmpi eq, %arg1, %c1_i32 : i32
    %19 = arith.extui %18 : i1 to i32
    %c0_i32_14 = arith.constant 0 : i32
    %20 = arith.cmpi ne, %19, %c0_i32_14 : i32
    scf.if %20 {
      %c0_15 = arith.constant 0 : index
      %c0_16 = arith.constant 0 : index
      %21 = vector.load %arg12[%c0_15, %c0_16] : memref<8x32xf32, #tpu.memory_space<vmem>>, vector<8x32xf32>
      %c0_17 = arith.constant 0 : index
      %c0_18 = arith.constant 0 : index
      %22 = vector.load %arg9[%c0_17, %c0_18] : memref<1x32xf32, #tpu.memory_space<vmem>>, vector<1x32xf32>
      %23 = vector.broadcast %22 : vector<1x32xf32> to vector<8x32xf32>
      %24 = arith.addf %21, %23 : vector<8x32xf32>
      %c0_19 = arith.constant 0 : index
      %c0_20 = arith.constant 0 : index
      %25 = vector.load %arg10[%c0_19, %c0_20] : memref<8x32xf32, #tpu.memory_space<vmem>>, vector<8x32xf32>
      %26 = arith.mulf %25, %24 : vector<8x32xf32>
      %c0_21 = arith.constant 0 : index
      %c0_22 = arith.constant 0 : index
      %27 = vector.load %arg11[%c0_21, %c0_22] : memref<8x32xf32, #tpu.memory_space<vmem>>, vector<8x32xf32>
      tpu.vector_store %arg11[%c0_21, %c0_22], %26 {strides = array<i32>} : memref<8x32xf32, #tpu.memory_space<vmem>>, vector<8x32xf32>,
    } else {
    }
    return
  }
  func.func @transform_0(%arg0: i32, %arg1: i32) -> (i32, i32) {
    %c0_i32 = arith.constant 0 : i32
    %c0_i32_0 = arith.constant 0 : i32
    return %arg0, %c0_i32 : i32, i32
  }
  func.func @transform_1(%arg0: i32, %arg1: i32) -> (i32, i32, i32) {
    %c0_i32 = arith.constant 0 : i32
    %c0_i32_0 = arith.constant 0 : i32
    %c0_i32_1 = arith.constant 0 : i32
    return %arg0, %c0_i32, %c0_i32_0 : i32, i32, i32
  }
  func.func @transform_2(%arg0: i32, %arg1: i32) -> (i32, i32) {
    %c0_i32 = arith.constant 0 : i32
    %c0_i32_0 = arith.constant 0 : i32
    return %arg0, %c0_i32 : i32, i32
  }
  func.func @transform_3(%arg0: i32, %arg1: i32) -> (i32, i32) {
    %c0_i32 = arith.constant 0 : i32
    %c0_i32_0 = arith.constant 0 : i32
    %c0_i32_1 = arith.constant 0 : i32
    return %c0_i32, %c0_i32_0 : i32, i32
  }
  func.func @transform_4(%arg0: i32, %arg1: i32) -> (i32, i32) {
    %c0_i32 = arith.constant 0 : i32
    %c0_i32_0 = arith.constant 0 : i32
    return %c0_i32, %arg1 : i32, i32
  }
  func.func @transform_5(%arg0: i32, %arg1: i32) -> (i32, i32) {
    %c0_i32 = arith.constant 0 : i32
    %c0_i32_0 = arith.constant 0 : i32
    return %c0_i32, %arg1 : i32, i32
  }
  func.func @transform_6(%arg0: i32, %arg1: i32) -> (i32, i32) {
    %c0_i32 = arith.constant 0 : i32
    %c0_i32_0 = arith.constant 0 : i32
    return %arg1, %c0_i32 : i32, i32
  }
  func.func @transform_7(%arg0: i32, %arg1: i32) -> (i32, i32) {
    %c0_i32 = arith.constant 0 : i32
    %c0_i32_0 = arith.constant 0 : i32
    %c0_i32_1 = arith.constant 0 : i32
    return %c0_i32, %c0_i32_0 : i32, i32
  }
  func.func @transform_8(%arg0: i32, %arg1: i32) -> (i32, i32) {
    %c0_i32 = arith.constant 0 : i32
    %c0_i32_0 = arith.constant 0 : i32
    return %arg0, %c0_i32 : i32, i32
  }
  func.func @transform_9(%arg0: i32, %arg1: i32) -> (i32, i32) {
    %c0_i32 = arith.constant 0 : i32
    %c0_i32_0 = arith.constant 0 : i32
    return %arg0, %c0_i32 : i32, i32
  }
}

</mosaic_0001>

<llo_original>
// kernel: tpu_custom_call.1
$region0: #{tpu_custom_call.1}
  #allocation0 [shape = 'u32[]', space=smem, size = 0x4, offset = 0x4, fixed_abs, tag = 'smem constant byte address 0x4 - core index']
  #allocation1 [shape = 'u32[72,128]{1,0:T(1,128)}', space=vmem, size = 0x9000, scoped, tag = 'internal scratch']
  #allocation2 [shape = 'f32[8,32]{1,0:T(8,128)}', space=vmem, size = 0x1000, scoped, tag = 'scratch operand']
  #allocation3 [shape = 'bf16[8,32]{1,0:T(8,128)(2,1)}', space=vmem, size = 0x800, scoped, tag = 'scratch operand']
  %s0 = inlined_call_operand.vmem [shape: f32[16,32], index: 0, kind: input, shape index: {}]
  %s1 = inlined_call_operand.vmem [shape: f32[2,1,32], index: 1, kind: input, shape index: {}]
  %s2 = inlined_call_operand.vmem [shape: f32[16,1], index: 2, kind: input, shape index: {}]
  %s3 = inlined_call_operand.vmem [shape: f32[1,32], index: 3, kind: input, shape index: {}]
  %s4 = inlined_call_operand.vmem [shape: bf16[32,256], index: 4, kind: input, shape index: {}]
  %s5 = inlined_call_operand.vmem [shape: f32[1,256], index: 5, kind: input, shape index: {}]
  %s6 = inlined_call_operand.vmem [shape: bf16[256,32], index: 6, kind: input, shape index: {}]
  %s7 = inlined_call_operand.vmem [shape: f32[1,32], index: 7, kind: input, shape index: {}]
  %s8 = inlined_call_operand.vmem [shape: f32[16,32], index: 8, kind: input, shape index: {}]
  %s9 = inlined_call_operand.hbm [shape: f32[16,32], index: 9, kind: output, shape index: {}]
  %s10 = sld [smem:[#allocation0]]
  $region118: #{tpu_custom_call.1} parent=0
    _
  %s12 = ssub.s32 1, %s10
  %s13 = scalar_select 0, %s12, %s10
  $region1: #{tpu_custom_call.1} parent=0
    #allocation4 [shape = 'u8[16384]{0}', space=vmem, size = 0x4000, scoped, tag = 'input window, operand 4']
    #allocation5 [shape = 'u8[8192]{0}', space=vmem, size = 0x2000, scoped, tag = 'output window, operand 0']
    #allocation6 [shape = 's32[2]{0}', space=sflag, size = 0x8, scoped, tag = 'scoped memory for tpu_custom_call.1']
    %14 = vsyncpa [#allocation6], 0
    %s15 = scalar_lea.sflag [#allocation6], 1
    %16 = vsyncpa %s15, 0
    loop: start=0, step=1, limit=6
    $region2: #{tpu_custom_call.1} parent=1 // loop_pre_header
      _
    $region3: #{tpu_custom_call.1} parent=1 // loop_header
      %s18 = sphi 0, %s22
      %p19 = scmp.ge.s32.totalorder %s18, 6
      %s25 = sphi 0, %s37
      %s26 = sphi 0, %s33
      %s27 = sphi 0, %s25
      %s28 = sphi 0, %s26
      %s29 = sphi 0, %s27
      %s30 = sphi 0, %s28
      %s40 = sphi 0, %s42
      %s43 = sphi 0, %s40
      %s44 = sphi 0, %s43
      %s60 = sphi 0, %s44
      %s66 = sphi 0, %s68
      %s69 = sphi 0, %s66
      %s70 = sphi 0, %s69
      %s86 = sphi 0, %s70
      %s92 = sphi 0, %s94
      %s95 = sphi 0, %s92
      %s96 = sphi 0, %s95
      %s112 = sphi 0, %s96
      %s116 = sphi 0, %s116
      %s118 = sphi 0, %s116
      %s119 = sphi 0, %s118
      %s133 = sphi 0, %s119
      %s139 = sphi 0, %s141
      %s142 = sphi 0, %s139
      %s143 = sphi 0, %s142
      %s159 = sphi 0, %s143
      %s165 = sphi 0, %s167
      %s168 = sphi 0, %s165
      %s169 = sphi 0, %s168
      %s185 = sphi 0, %s169
      %s191 = sphi 0, %s193
      %s194 = sphi 0, %s191
      %s195 = sphi 0, %s194
      %s211 = sphi 0, %s195
      %s215 = sphi 0, %s215
      %s217 = sphi 0, %s215
      %s218 = sphi 0, %s217
      %s232 = sphi 0, %s218
      %s238 = sphi 0, %s240
      %s241 = sphi 0, %s238
      %s242 = sphi 0, %s241
      %s258 = sphi 0, %s242
      %s264 = sphi 0, %s266
      %s267 = sphi 0, %s264
      %s268 = sphi 0, %s267
      %s284 = sphi 0, %s268
    $region4: #{tpu_custom_call.1} parent=1 // loop_header_branch
      %21 = sbr.rel (%p19) target = $region8
    $region5: #{tpu_custom_call.1} parent=1 // loop_body
      %s23 = ssub.s32 %s18, 1
      %s24 = ssub.s32 %s18, 2
      %s31 = sadd.s32 1, %s26
      %p32 = scmp.ge.s32.totalorder %s31, 2
      %s33 = scalar_select %p32, 0, %s31
      %s34 = sadd.s32 1, %s25
      %s35 = scalar_select %p32, %s34, %s25
      %p36 = scmp.ge.s32.totalorder %s35, 2
      %s37 = scalar_select %p36, 0, %s35
      %s38 = ssub.s32 %s25, %s37
      %p39 = scmp.eq.s32.totalorder %s38, 0
      %s41 = sadd.s32 %s40, 1
      %s42 = scalar_select %p39, %s40, %s41
      %p45 = pneg %p39
      %p46 = scmp.eq.s32.totalorder %s18, 3
      %p47 = por %p45, %p46
      %p48 = scmp.ne.s32.totalorder %s40, %s43
      %p49 = scmp.eq.s32.totalorder %s18, 0
      %p50 = por %p48, %p49
      %p51 = scmp.ne.s32.totalorder %s40, %s43
      %p52 = scmp.eq.s32.totalorder %s23, 3
      %p53 = por %p51, %p52
      %p54 = scmp.ne.s32.totalorder %s43, %s44
      %p55 = scmp.eq.s32.totalorder %s23, 0
      %p56 = por %p54, %p55
      %p57 = scmp.ne.s32.totalorder %s43, %s44
      %p58 = scmp.eq.s32.totalorder %s24, 3
      %p59 = por %p57, %p58
      %p61 = scmp.ne.s32.totalorder %s44, %s60
      %p62 = scmp.eq.s32.totalorder %s24, 0
      %p63 = por %p61, %p62
      %s64 = ssub.s32 %s25, %s37
      %p65 = scmp.eq.s32.totalorder %s64, 0
      %s67 = sadd.s32 %s66, 1
      %s68 = scalar_select %p65, %s66, %s67
      %p71 = pneg %p65
      %p72 = scmp.eq.s32.totalorder %s18, 3
      %p73 = por %p71, %p72
      %p74 = scmp.ne.s32.totalorder %s66, %s69
      %p75 = scmp.eq.s32.totalorder %s18, 0
      %p76 = por %p74, %p75
      %p77 = scmp.ne.s32.totalorder %s66, %s69
      %p78 = scmp.eq.s32.totalorder %s23, 3
      %p79 = por %p77, %p78
      %p80 = scmp.ne.s32.totalorder %s69, %s70
      %p81 = scmp.eq.s32.totalorder %s23, 0
      %p82 = por %p80, %p81
      %p83 = scmp.ne.s32.totalorder %s69, %s70
      %p84 = scmp.eq.s32.totalorder %s24, 3
      %p85 = por %p83, %p84
      %p87 = scmp.ne.s32.totalorder %s70, %s86
      %p88 = scmp.eq.s32.totalorder %s24, 0
      %p89 = por %p87, %p88
      %s90 = ssub.s32 %s25, %s37
      %p91 = scmp.eq.s32.totalorder %s90, 0
      %s93 = sadd.s32 %s92, 1
      %s94 = scalar_select %p91, %s92, %s93
      %p97 = pneg %p91
      %p98 = scmp.eq.s32.totalorder %s18, 3
      %p99 = por %p97, %p98
      %p100 = scmp.ne.s32.totalorder %s92, %s95
      %p101 = scmp.eq.s32.totalorder %s18, 0
      %p102 = por %p100, %p101
      %p103 = scmp.ne.s32.totalorder %s92, %s95
      %p104 = scmp.eq.s32.totalorder %s23, 3
      %p105 = por %p103, %p104
      %p106 = scmp.ne.s32.totalorder %s95, %s96
      %p107 = scmp.eq.s32.totalorder %s23, 0
      %p108 = por %p106, %p107
      %p109 = scmp.ne.s32.totalorder %s95, %s96
      %p110 = scmp.eq.s32.totalorder %s24, 3
      %p111 = por %p109, %p110
      %p113 = scmp.ne.s32.totalorder %s96, %s112
      %p114 = scmp.eq.s32.totalorder %s24, 0
      %p115 = por %p113, %p114
      %s117 = sadd.s32 %s116, 1
      %p120 = scmp.eq.s32.totalorder %s18, 3
      %p121 = scmp.ne.s32.totalorder %s116, %s118
      %p122 = scmp.eq.s32.totalorder %s18, 0
      %p123 = por %p121, %p122
      %p124 = scmp.ne.s32.totalorder %s116, %s118
      %p125 = scmp.eq.s32.totalorder %s23, 3
      %p126 = por %p124, %p125
      %p127 = scmp.ne.s32.totalorder %s118, %s119
      %p128 = scmp.eq.s32.totalorder %s23, 0
      %p129 = por %p127, %p128
      %p130 = scmp.ne.s32.totalorder %s118, %s119
      %p131 = scmp.eq.s32.totalorder %s24, 3
      %p132 = por %p130, %p131
      %p134 = scmp.ne.s32.totalorder %s119, %s133
      %p135 = scmp.eq.s32.totalorder %s24, 0
      %p136 = por %p134, %p135
      %s137 = ssub.s32 %s26, %s33
      %p138 = scmp.eq.s32.totalorder %s137, 0
      %s140 = sadd.s32 %s139, 1
      %s141 = scalar_select %p138, %s139, %s140
      %p144 = pneg %p138
      %p145 = scmp.eq.s32.totalorder %s18, 3
      %p146 = por %p144, %p145
      %p147 = scmp.ne.s32.totalorder %s139, %s142
      %p148 = scmp.eq.s32.totalorder %s18, 0
      %p149 = por %p147, %p148
      %p150 = scmp.ne.s32.totalorder %s139, %s142
      %p151 = scmp.eq.s32.totalorder %s23, 3
      %p152 = por %p150, %p151
      %p153 = scmp.ne.s32.totalorder %s142, %s143
      %p154 = scmp.eq.s32.totalorder %s23, 0
      %p155 = por %p153, %p154
      %p156 = scmp.ne.s32.totalorder %s142, %s143
      %p157 = scmp.eq.s32.totalorder %s24, 3
      %p158 = por %p156, %p157
      %p160 = scmp.ne.s32.totalorder %s143, %s159
      %p161 = scmp.eq.s32.totalorder %s24, 0
      %p162 = por %p160, %p161
      %s163 = ssub.s32 %s26, %s33
      %p164 = scmp.eq.s32.totalorder %s163, 0
      %s166 = sadd.s32 %s165, 1
      %s167 = scalar_select %p164, %s165, %s166
      %p170 = pneg %p164
      %p171 = scmp.eq.s32.totalorder %s18, 3
      %p172 = por %p170, %p171
      %p173 = scmp.ne.s32.totalorder %s165, %s168
      %p174 = scmp.eq.s32.totalorder %s18, 0
      %p175 = por %p173, %p174
      %p176 = scmp.ne.s32.totalorder %s165, %s168
      %p177 = scmp.eq.s32.totalorder %s23, 3
      %p178 = por %p176, %p177
      %p179 = scmp.ne.s32.totalorder %s168, %s169
      %p180 = scmp.eq.s32.totalorder %s23, 0
      %p181 = por %p179, %p180
      %p182 = scmp.ne.s32.totalorder %s168, %s169
      %p183 = scmp.eq.s32.totalorder %s24, 3
      %p184 = por %p182, %p183
      %p186 = scmp.ne.s32.totalorder %s169, %s185
      %p187 = scmp.eq.s32.totalorder %s24, 0
      %p188 = por %p186, %p187
      %s189 = ssub.s32 %s26, %s33
      %p190 = scmp.eq.s32.totalorder %s189, 0
      %s192 = sadd.s32 %s191, 1
      %s193 = scalar_select %p190, %s191, %s192
      %p196 = pneg %p190
      %p197 = scmp.eq.s32.totalorder %s18, 3
      %p198 = por %p196, %p197
      %p199 = scmp.ne.s32.totalorder %s191, %s194
      %p200 = scmp.eq.s32.totalorder %s18, 0
      %p201 = por %p199, %p200
      %p202 = scmp.ne.s32.totalorder %s191, %s194
      %p203 = scmp.eq.s32.totalorder %s23, 3
      %p204 = por %p202, %p203
      %p205 = scmp.ne.s32.totalorder %s194, %s195
      %p206 = scmp.eq.s32.totalorder %s23, 0
      %p207 = por %p205, %p206
      %p208 = scmp.ne.s32.totalorder %s194, %s195
      %p209 = scmp.eq.s32.totalorder %s24, 3
      %p210 = por %p208, %p209
      %p212 = scmp.ne.s32.totalorder %s195, %s211
      %p213 = scmp.eq.s32.totalorder %s24, 0
      %p214 = por %p212, %p213
      %s216 = sadd.s32 %s215, 1
      %p219 = scmp.eq.s32.totalorder %s18, 3
      %p220 = scmp.ne.s32.totalorder %s215, %s217
      %p221 = scmp.eq.s32.totalorder %s18, 0
      %p222 = por %p220, %p221
      %p223 = scmp.ne.s32.totalorder %s215, %s217
      %p224 = scmp.eq.s32.totalorder %s23, 3
      %p225 = por %p223, %p224
      %p226 = scmp.ne.s32.totalorder %s217, %s218
      %p227 = scmp.eq.s32.totalorder %s23, 0
      %p228 = por %p226, %p227
      %p229 = scmp.ne.s32.totalorder %s217, %s218
      %p230 = scmp.eq.s32.totalorder %s24, 3
      %p231 = por %p229, %p230
      %p233 = scmp.ne.s32.totalorder %s218, %s232
      %p234 = scmp.eq.s32.totalorder %s24, 0
      %p235 = por %p233, %p234
      %s236 = ssub.s32 %s25, %s37
      %p237 = scmp.eq.s32.totalorder %s236, 0
      %s239 = sadd.s32 %s238, 1
      %s240 = scalar_select %p237, %s238, %s239
      %p243 = pneg %p237
      %p244 = scmp.eq.s32.totalorder %s18, 3
      %p245 = por %p243, %p244
      %p246 = scmp.ne.s32.totalorder %s238, %s241
      %p247 = scmp.eq.s32.totalorder %s18, 0
      %p248 = por %p246, %p247
      %p249 = scmp.ne.s32.totalorder %s238, %s241
      %p250 = scmp.eq.s32.totalorder %s23, 3
      %p251 = por %p249, %p250
      %p252 = scmp.ne.s32.totalorder %s241, %s242
      %p253 = scmp.eq.s32.totalorder %s23, 0
      %p254 = por %p252, %p253
      %p255 = scmp.ne.s32.totalorder %s241, %s242
      %p256 = scmp.eq.s32.totalorder %s24, 3
      %p257 = por %p255, %p256
      %p259 = scmp.ne.s32.totalorder %s242, %s258
      %p260 = scmp.eq.s32.totalorder %s24, 0
      %p261 = por %p259, %p260
      %s262 = ssub.s32 %s25, %s37
      %p263 = scmp.eq.s32.totalorder %s262, 0
      %s265 = sadd.s32 %s264, 1
      %s266 = scalar_select %p263, %s264, %s265
      %p269 = pneg %p263
      %p270 = scmp.eq.s32.totalorder %s18, 3
      %p271 = por %p269, %p270
      %p272 = scmp.ne.s32.totalorder %s264, %s267
      %p273 = scmp.eq.s32.totalorder %s18, 0
      %p274 = por %p272, %p273
      %p275 = scmp.ne.s32.totalorder %s264, %s267
      %p276 = scmp.eq.s32.totalorder %s23, 3
      %p277 = por %p275, %p276
      %p278 = scmp.ne.s32.totalorder %s267, %s268
      %p279 = scmp.eq.s32.totalorder %s23, 0
      %p280 = por %p278, %p279
      %p281 = scmp.ne.s32.totalorder %s267, %s268
      %p282 = scmp.eq.s32.totalorder %s24, 3
      %p283 = por %p281, %p282
      %p285 = scmp.ne.s32.totalorder %s268, %s284
      %p286 = scmp.eq.s32.totalorder %s24, 0
      %p287 = por %p285, %p286
      %p288 = scmp.le.s32.totalorder 1, %s18
      %p289 = scmp.lt.s32.totalorder %s18, 5
      %p290 = pnand %p288, %p289
      %p291 = pneg %p290
      // Predicated region
      $region9: #{tpu_custom_call.1} parent=5 // pred_check
        _
      $region10: #{tpu_custom_call.1} parent=5 // pred_check_branch
        %293 = sbr.rel (%p290) target = $region12
      $region11: #{tpu_custom_call.1} parent=5 // pred_region
        %s294 = ssub.s32 %s18, 1
        // Predicated region
        $region13: #{tpu_custom_call.1} parent=11 // pred_check
          %p295 = pneg %p129
        $region14: #{tpu_custom_call.1} parent=11 // pred_check_branch
          %297 = sbr.rel (%p295) target = $region16
        $region15: #{tpu_custom_call.1} parent=11 // pred_region
          _
        $region16: #{tpu_custom_call.1} parent=11 // pred_fallthru
          _
        // Predicated region
        $region17: #{tpu_custom_call.1} parent=11 // pred_check
          %p298 = pneg %p228
        $region18: #{tpu_custom_call.1} parent=11 // pred_check_branch
          %300 = sbr.rel (%p298) target = $region20
        $region19: #{tpu_custom_call.1} parent=11 // pred_region
          _
        $region20: #{tpu_custom_call.1} parent=11 // pred_fallthru
          _
      $region12: #{tpu_custom_call.1} parent=5 // pred_fallthru
        _
      %p301 = scmp.lt.s32.totalorder %s18, 4
      // Predicated region
      $region21: #{tpu_custom_call.1} parent=5 // pred_check
        %p302 = pneg %p301
      $region22: #{tpu_custom_call.1} parent=5 // pred_check_branch
        %304 = sbr.rel (%p302) target = $region24
      $region23: #{tpu_custom_call.1} parent=5 // pred_region
        // Predicated region
        $region25: #{tpu_custom_call.1} parent=23 // pred_check
          %p305 = pneg %p50
        $region26: #{tpu_custom_call.1} parent=23 // pred_check_branch
          %307 = sbr.rel (%p305) target = $region28
        $region27: #{tpu_custom_call.1} parent=23 // pred_region
          %p308 = scmp.lt.s32.totalorder %s25, 1
          %s309 = scalar_select %p308, %s25, 1
          %s310 = smul.addr %s309, 8
          %s311 = scalar_lea.vmem %s0, %s310
        $region28: #{tpu_custom_call.1} parent=23 // pred_fallthru
          _
        // Predicated region
        $region29: #{tpu_custom_call.1} parent=23 // pred_check
          %p312 = pneg %p76
        $region30: #{tpu_custom_call.1} parent=23 // pred_check_branch
          %314 = sbr.rel (%p312) target = $region32
        $region31: #{tpu_custom_call.1} parent=23 // pred_region
          %p315 = scmp.lt.s32.totalorder %s25, 1
          %s316 = scalar_select %p315, %s25, 1
          %s317 = scalar_lea.vmem %s1, %s316
        $region32: #{tpu_custom_call.1} parent=23 // pred_fallthru
          _
        // Predicated region
        $region33: #{tpu_custom_call.1} parent=23 // pred_check
          %p318 = pneg %p102
        $region34: #{tpu_custom_call.1} parent=23 // pred_check_branch
          %320 = sbr.rel (%p318) target = $region36
        $region35: #{tpu_custom_call.1} parent=23 // pred_region
          %p321 = scmp.lt.s32.totalorder %s25, 1
          %s322 = scalar_select %p321, %s25, 1
          %s323 = smul.addr %s322, 8
          %s324 = scalar_lea.vmem %s2, %s323
        $region36: #{tpu_custom_call.1} parent=23 // pred_fallthru
          _
        // Predicated region
        $region37: #{tpu_custom_call.1} parent=23 // pred_check
          %p325 = pneg %p149
        $region38: #{tpu_custom_call.1} parent=23 // pred_check_branch
          %327 = sbr.rel (%p325) target = $region40
        $region39: #{tpu_custom_call.1} parent=23 // pred_region
          %s328 = sand.u32 %s139, 1
          %s329 = sand.u32 %s139, 1
          %s330 = smul.addr %s329, 16
          %s331 = scalar_lea.vmem [#allocation4], %s330
          %s332 = smul.addr %s26, 4
          %s333 = scalar_lea.vmem %s4, %s332
          // Predicated region
          $region41: #{tpu_custom_call.1} parent=39 // pred_check
            _
          $region42: #{tpu_custom_call.1} parent=39 // pred_check_branch
            %335 = sbr.rel (0) target = $region44
          $region43: #{tpu_custom_call.1} parent=39 // pred_region
            // Predicated region
            $region45: #{tpu_custom_call.1} parent=43 // pred_check
              _
            $region46: #{tpu_custom_call.1} parent=43 // pred_check_branch
              %337 = sbr.rel target = $region48
            $region47: #{tpu_custom_call.1} parent=43 // pred_region
              // Predicated region
              $region60: #{tpu_custom_call.1} parent=47 // pred_check
                _
              $region61: #{tpu_custom_call.1} parent=47 // pred_check_branch
                %359 = sbr.rel (0) target = $region63
              $region62: #{tpu_custom_call.1} parent=47 // pred_region
                loop: start=0, step=1, limit=1
                $region64: #{tpu_custom_call.1} parent=62 // loop_pre_header
                  _
                $region65: #{tpu_custom_call.1} parent=62 // loop_header
                  %s361 = sphi 0, %s365
                  %p362 = scmp.ge.s32.totalorder %s361, 1
                  %s366 = sphi %s333, %s333
                  %s367 = sphi %s331, %s331
                $region66: #{tpu_custom_call.1} parent=62 // loop_header_branch
                  %364 = sbr.rel (%p362) target = $region70
                $region67: #{tpu_custom_call.1} parent=62 // loop_body
                  _
                $region68: #{tpu_custom_call.1} parent=62 // loop_footer
                  %s365 = sadd.s32 1, %s361
                $region69: #{tpu_custom_call.1} parent=62 // loop_footer_branch
                  %360 = sbr.rel target = $region65
                $region70: #{tpu_custom_call.1} parent=62 // loop_exit
                  _
                %s369 = ssub.s32 16, 1
                loop: start=0, step=1, limit=1
                $region71: #{tpu_custom_call.1} parent=62 // loop_pre_header
                  _
                $region72: #{tpu_custom_call.1} parent=62 // loop_header
                  %s371 = sphi 0, %s375
                  %p372 = scmp.ge.s32.totalorder %s371, 1
                  %s376 = sphi %s333, %s333
                  %s377 = sphi %s331, %s331
                $region73: #{tpu_custom_call.1} parent=62 // loop_header_branch
                  %374 = sbr.rel (%p372) target = $region77
                $region74: #{tpu_custom_call.1} parent=62 // loop_body
                  %v378 = vld [vmem:[%s376] sm:%s369]
                  %379 = vst [vmem:[%s377] sm:%s369] %v378
                  %v380 = vld [vmem:[%s376 + $0x8] sm:%s369]
                  %381 = vst [vmem:[%s377 + $0x4] sm:%s369] %v380
                  %v382 = vld [vmem:[%s376 + $0x10] sm:%s369]
                  %383 = vst [vmem:[%s377 + $0x8] sm:%s369] %v382
                  %v384 = vld [vmem:[%s376 + $0x18] sm:%s369]
                  %385 = vst [vmem:[%s377 + $0xc] sm:%s369] %v384
                $region75: #{tpu_custom_call.1} parent=62 // loop_footer
                  %s375 = sadd.s32 1, %s371
                $region76: #{tpu_custom_call.1} parent=62 // loop_footer_branch
                  %370 = sbr.rel target = $region72
                $region77: #{tpu_custom_call.1} parent=62 // loop_exit
                  _
              $region63: #{tpu_custom_call.1} parent=47 // pred_fallthru
                _
            $region48: #{tpu_custom_call.1} parent=43 // pred_fallthru
              _
            // Predicated region
            $region49: #{tpu_custom_call.1} parent=43 // pred_check
              _
            $region50: #{tpu_custom_call.1} parent=43 // pred_check_branch
              %339 = sbr.rel (0) target = $region52
            $region51: #{tpu_custom_call.1} parent=43 // pred_region
              %s341 = ssub.s32 16, 1
              loop: start=0, step=1, limit=1
              $region53: #{tpu_custom_call.1} parent=51 // loop_pre_header
                _
              $region54: #{tpu_custom_call.1} parent=51 // loop_header
                %s343 = sphi 0, %s347
                %p344 = scmp.ge.s32.totalorder %s343, 1
                %s348 = sphi %s333, %s333
                %s349 = sphi %s331, %s331
              $region55: #{tpu_custom_call.1} parent=51 // loop_header_branch
                %346 = sbr.rel (%p344) target = $region59
              $region56: #{tpu_custom_call.1} parent=51 // loop_body
                %v350 = vld [vmem:[%s348] sm:%s341]
                %351 = vst [vmem:[%s349] sm:%s341] %v350
                %v352 = vld [vmem:[%s348 + $0x8] sm:%s341]
                %353 = vst [vmem:[%s349 + $0x4] sm:%s341] %v352
                %v354 = vld [vmem:[%s348 + $0x10] sm:%s341]
                %355 = vst [vmem:[%s349 + $0x8] sm:%s341] %v354
                %v356 = vld [vmem:[%s348 + $0x18] sm:%s341]
                %357 = vst [vmem:[%s349 + $0xc] sm:%s341] %v356
              $region57: #{tpu_custom_call.1} parent=51 // loop_footer
                %s347 = sadd.s32 1, %s343
              $region58: #{tpu_custom_call.1} parent=51 // loop_footer_branch
                %342 = sbr.rel target = $region54
              $region59: #{tpu_custom_call.1} parent=51 // loop_exit
                _
            $region52: #{tpu_custom_call.1} parent=43 // pred_fallthru
              _
          $region44: #{tpu_custom_call.1} parent=39 // pred_fallthru
            _
          %386 = vnop
        $region40: #{tpu_custom_call.1} parent=23 // pred_fallthru
          _
        // Predicated region
        $region78: #{tpu_custom_call.1} parent=23 // pred_check
          %p387 = pneg %p175
        $region79: #{tpu_custom_call.1} parent=23 // pred_check_branch
          %389 = sbr.rel (%p387) target = $region81
        $region80: #{tpu_custom_call.1} parent=23 // pred_region
          %p390 = scmp.lt.s32.totalorder %s26, 1
          %s391 = scalar_select %p390, %s26, 1
          %s392 = scalar_lea.vmem %s5, %s391
        $region81: #{tpu_custom_call.1} parent=23 // pred_fallthru
          _
        // Predicated region
        $region82: #{tpu_custom_call.1} parent=23 // pred_check
          %p393 = pneg %p201
        $region83: #{tpu_custom_call.1} parent=23 // pred_check_branch
          %395 = sbr.rel (%p393) target = $region85
        $region84: #{tpu_custom_call.1} parent=23 // pred_region
          %s396 = smul.u32 16, %s26
          %p397 = scmp.lt.s32.totalorder %s396, 31
          %s398 = scalar_select %p397, %s396, 31
          %s399 = smul.addr %s398, 4
          %s400 = scalar_lea.vmem %s6, %s399
          %s401 = smul.u32 16, %s26
        $region85: #{tpu_custom_call.1} parent=23 // pred_fallthru
          _
        // Predicated region
        $region86: #{tpu_custom_call.1} parent=23 // pred_check
          %p402 = pneg %p248
        $region87: #{tpu_custom_call.1} parent=23 // pred_check_branch
          %404 = sbr.rel (%p402) target = $region89
        $region88: #{tpu_custom_call.1} parent=23 // pred_region
          %p405 = scmp.lt.s32.totalorder %s25, 1
          %s406 = scalar_select %p405, %s25, 1
          %s407 = smul.addr %s406, 8
          %s408 = scalar_lea.vmem %s8, %s407
        $region89: #{tpu_custom_call.1} parent=23 // pred_fallthru
          _
      $region24: #{tpu_custom_call.1} parent=5 // pred_fallthru
        _
      %p409 = scmp.le.s32.totalorder 1, %s18
      %p410 = scmp.lt.s32.totalorder %s18, 5
      %p411 = pnand %p409, %p410
      %p412 = pneg %p411
      // Predicated region
      $region90: #{tpu_custom_call.1} parent=5 // pred_check
        _
      $region91: #{tpu_custom_call.1} parent=5 // pred_check_branch
        %414 = sbr.rel (%p411) target = $region93
      $region92: #{tpu_custom_call.1} parent=5 // pred_region
        %s415 = ssub.s32 %s18, 1
        %s416 = sand.u32 %s142, 1
        %s417 = sand.u32 %s142, 1
        %s418 = smul.addr %s417, 16
        %s419 = scalar_lea.vmem [#allocation4], %s418
        // Predicated region
        $region94: #{tpu_custom_call.1} parent=92 // pred_check
          %p420 = pneg %p155
        $region95: #{tpu_custom_call.1} parent=92 // pred_check_branch
          %422 = sbr.rel (%p420) target = $region97
        $region96: #{tpu_custom_call.1} parent=92 // pred_region
          _
        $region97: #{tpu_custom_call.1} parent=92 // pred_fallthru
          _
        %p423 = scmp.lt.s32.totalorder %s27, 1
        %s424 = scalar_select %p423, %s27, 1
        %s425 = smul.addr %s424, 8
        %s426 = scalar_lea.vmem %s0, %s425
        %p427 = pneg %p56
        %p428 = pneg %p53
        %p429 = scmp.lt.s32.totalorder %s27, 1
        %s430 = scalar_select %p429, %s27, 1
        %s431 = scalar_lea.vmem %s1, %s430
        %p432 = pneg %p82
        %p433 = pneg %p79
        %p434 = scmp.lt.s32.totalorder %s27, 1
        %s435 = scalar_select %p434, %s27, 1
        %s436 = smul.addr %s435, 8
        %s437 = scalar_lea.vmem %s2, %s436
        %p438 = pneg %p108
        %p439 = pneg %p105
        %p440 = pneg %p129
        %p441 = pneg %p126
        %s442 = sand.u32 %s142, 1
        %s443 = sand.u32 %s142, 1
        %s444 = smul.addr %s443, 16
        %s445 = scalar_lea.vmem [#allocation4], %s444
        %p446 = pneg %p155
        %p447 = pneg %p152
        %p448 = scmp.lt.s32.totalorder %s28, 1
        %s449 = scalar_select %p448, %s28, 1
        %s450 = scalar_lea.vmem %s5, %s449
        %p451 = pneg %p181
        %p452 = pneg %p178
        %s453 = smul.u32 16, %s28
        %p454 = scmp.lt.s32.totalorder %s453, 31
        %s455 = scalar_select %p454, %s453, 31
        %s456 = smul.addr %s455, 4
        %s457 = scalar_lea.vmem %s6, %s456
        %p458 = pneg %p207
        %p459 = pneg %p204
        %p460 = pneg %p228
        %p461 = pneg %p225
        %p462 = scmp.lt.s32.totalorder %s27, 1
        %s463 = scalar_select %p462, %s27, 1
        %s464 = smul.addr %s463, 8
        %s465 = scalar_lea.vmem %s8, %s464
        %p466 = pneg %p254
        %p467 = pneg %p251
        %p468 = pneg %p280
        %p469 = pneg %p277
        %s470 = sand.u32 %s267, 1
        %s471 = scalar_lea.sflag [#allocation6], %s470
        %s472 = sand.u32 %s267, 1
        %s473 = smul.addr %s472, 8
        %s474 = scalar_lea.vmem [#allocation5], %s473
        %p475 = scmp.lt.s32.totalorder %s27, 1
        %s476 = scalar_select %p475, %s27, 1
        %s477 = smul.addr %s476, 8
        %s478 = scalar_lea.vmem %s0, %s477
        %p479 = scmp.lt.s32.totalorder %s27, 1
        %s480 = scalar_select %p479, %s27, 1
        %s481 = scalar_lea.vmem %s1, %s480
        %p482 = scmp.lt.s32.totalorder %s27, 1
        %s483 = scalar_select %p482, %s27, 1
        %s484 = smul.addr %s483, 8
        %s485 = scalar_lea.vmem %s2, %s484
        %p486 = scmp.lt.s32.totalorder %s28, 1
        %s487 = scalar_select %p486, %s28, 1
        %s488 = scalar_lea.vmem %s5, %s487
        %s489 = smul.u32 16, %s28
        %p490 = scmp.lt.s32.totalorder %s489, 31
        %s491 = scalar_select %p490, %s489, 31
        %s492 = smul.addr %s491, 4
        %s493 = scalar_lea.vmem %s6, %s492
        %s494 = smul.u32 16, %s28
        %p495 = scmp.lt.s32.totalorder %s27, 1
        %s496 = scalar_select %p495, %s27, 1
        %s497 = smul.addr %s496, 8
        %s498 = scalar_lea.vmem %s8, %s497
        %p500 = scmp.eq.s32.totalorder %s28, 0
        // Predicated region
        $region98: #{tpu_custom_call.1} parent=92 // pred_check
          %p501 = pneg %p500
        $region99: #{tpu_custom_call.1} parent=92 // pred_check_branch
          %503 = sbr.rel (%p501) target = $region101
        $region100: #{tpu_custom_call.1} parent=92 // pred_region
          %vm504 = vcmask 261120
          %505 = vst.msk [vmem:[#allocation2] sm:$0xff] %vm504, 0.0
          %v506 = vld [vmem:[%s478] sm:$0xff]
          %v507 = vrot.slane %v506, 7
          %v508 = vlaneseq
          %v509 = vshrl.u32 %v508, 7
          %vm510 = vcmp.eq.s32.totalorder %v509, 0
          %v511 = vld [vmem:[%s481] sm:$0x1]
          %v513 = vperm.slane %v511, 0
          %v515 = vsel %vm510, %v513, %v507
          %v516 = vld [vmem:[%s485] sm:$0xff]
          %518 = vset.pattern.permute.xlu0 0
          %519 = vperm.xlu0 %518, %v516
          %v520 = vpop.permute.xlu0 %519
          %v522 = vmul.f32 %v515, %v520
          %v523 = vsub.f32 %v522, %v506
          %v524 = vld [vmem:[%s3] sm:$0x1]
          %v526 = vperm.slane %v524, 0
          %v528 = vmul.f32 %v523, %v526
          %v529 = vadd.f32 %v506, %v528
          %v530 = vpack.c.bf16 %v529, %v529
          %vm531 = vcmask 257024
          %532 = vst.msk [vmem:[#allocation3] sm:$0xf] %vm531, %v530
        $region101: #{tpu_custom_call.1} parent=92 // pred_fallthru
          _
        %v533 = vld [vmem:[#allocation3] sm:$0xf]
        %v534 = vld [vmem:[%s419] sm:$0xf]
        %v535 = vld [vmem:[%s419 + $0x4] sm:$0xf]
        %v536 = vld [vmem:[%s419 + $0x8] sm:$0xf]
        %v537 = vld [vmem:[%s419 + $0xc] sm:$0xf]
        %v538 = vld [vmem:[%s488] sm:$0x1]
        %v540 = vperm.slane %v538, 0
        %v546 = vunpack.c.l.b16 %v534
        %v547 = vunpack.c.l.b16 %v535
        %v548 = vunpack.c.l.b16 %v536
        %v549 = vunpack.c.l.b16 %v537
        %v550 = vpack.c.b16 %v547, %v546
        %v551 = vpack.c.b16 %v549, %v548
        %vm554 = vcmask 261120
        %v556 = vsel %vm554, %v533, 0
        %558 = vmatpush.bf16.msra.mxu0 0
        %559 = vmatpush.bf16.msra.mxu0 0
        %560 = vmatpush.bf16.msra.mxu0 0
        %561 = vmatpush.bf16.msra.mxu0 0
        %562 = vmatpush.bf16.msra.mxu0 0
        %563 = vmatpush.bf16.msra.mxu0 0
        %564 = vmatpush.bf16.msra.mxu0 %v551
        %565 = vmatpush.bf16.msra.mxu0 %v550
        %566 = vmatmul.bf16.gmra.mxu0 %v556
        %v567 = vpop.f32.mrf.mxu0
        %v568 = vadd.f32 %v540, %v567
        %v569 = vpop.f32.mrf.mxu0
        %570 = vdwg.mxu0
        %v571 = vmax.f32 %v568, 0.0
        %v572 = vmul.f32 %v571, %v571
        %v573 = vld [vmem:[#allocation2] sm:$0xff]
        %v574 = vpack.c.bf16 %v572, %v572
        %v575 = vld [vmem:[%s493] sm:$0xf]
        %v576 = vld [vmem:[%s493 + $0x4] sm:$0xf]
        %v577 = vld [vmem:[%s493 + $0x8] sm:$0xf]
        %v578 = vld [vmem:[%s493 + $0xc] sm:$0xf]
        %v579 = vld [vmem:[%s493 + $0x10] sm:$0xf]
        %v580 = vld [vmem:[%s493 + $0x14] sm:$0xf]
        %v581 = vld [vmem:[%s493 + $0x18] sm:$0xf]
        %v582 = vld [vmem:[%s493 + $0x1c] sm:$0xf]
        %v583 = vld [vmem:[%s493 + $0x20] sm:$0xf]
        %v584 = vld [vmem:[%s493 + $0x24] sm:$0xf]
        %v585 = vld [vmem:[%s493 + $0x28] sm:$0xf]
        %v586 = vld [vmem:[%s493 + $0x2c] sm:$0xf]
        %v587 = vld [vmem:[%s493 + $0x30] sm:$0xf]
        %v588 = vld [vmem:[%s493 + $0x34] sm:$0xf]
        %v589 = vld [vmem:[%s493 + $0x38] sm:$0xf]
        %v590 = vld [vmem:[%s493 + $0x3c] sm:$0xf]
        %v607 = vunpack.c.l.b16 %v575
        %v608 = vunpack.c.l.b16 %v576
        %v609 = vunpack.c.l.b16 %v577
        %v610 = vunpack.c.l.b16 %v578
        %v611 = vunpack.c.l.b16 %v579
        %v612 = vunpack.c.l.b16 %v580
        %v613 = vunpack.c.l.b16 %v581
        %v614 = vunpack.c.l.b16 %v582
        %v615 = vunpack.c.l.b16 %v583
        %v616 = vunpack.c.l.b16 %v584
        %v617 = vunpack.c.l.b16 %v585
        %v618 = vunpack.c.l.b16 %v586
        %v619 = vunpack.c.l.b16 %v587
        %v620 = vunpack.c.l.b16 %v588
        %v621 = vunpack.c.l.b16 %v589
        %v622 = vunpack.c.l.b16 %v590
        %v623 = vpack.c.b16 %v608, %v607
        %v624 = vpack.c.b16 %v610, %v609
        %v625 = vpack.c.b16 %v612, %v611
        %v626 = vpack.c.b16 %v614, %v613
        %v627 = vpack.c.b16 %v616, %v615
        %v628 = vpack.c.b16 %v618, %v617
        %v629 = vpack.c.b16 %v620, %v619
        %v630 = vpack.c.b16 %v622, %v621
        %639 = vmatpush.bf16.msra.mxu0 %v630
        %640 = vmatpush.bf16.msra.mxu0 %v629
        %641 = vmatpush.bf16.msra.mxu0 %v628
        %642 = vmatpush.bf16.msra.mxu0 %v627
        %643 = vmatpush.bf16.msra.mxu0 %v626
        %644 = vmatpush.bf16.msra.mxu0 %v625
        %645 = vmatpush.bf16.msra.mxu0 %v624
        %646 = vmatpush.bf16.msra.mxu0 %v623
        %647 = vmatmul.bf16.gmra.mxu0 %v574
        %v648 = vpop.f32.mrf.mxu0
        %v649 = vadd.f32 0.0, %v648
        %v650 = vpop.f32.mrf.mxu0
        %651 = vdwg.mxu0
        %v652 = vadd.f32 %v573, %v649
        %653 = vst.msk [vmem:[#allocation2] sm:$0xff] %vm554, %v652
        %p654 = scmp.eq.s32.totalorder %s28, 1
        // Predicated region
        $region102: #{tpu_custom_call.1} parent=92 // pred_check
          %p655 = pneg %p654
        $region103: #{tpu_custom_call.1} parent=92 // pred_check_branch
          %657 = sbr.rel (%p655) target = $region105
        $region104: #{tpu_custom_call.1} parent=92 // pred_region
          %v658 = vld [vmem:[#allocation2] sm:$0xff]
          %v659 = vld [vmem:[%s7] sm:$0x1]
          %v661 = vperm.slane %v659, 0
          %v663 = vadd.f32 %v658, %v661
          %v664 = vld [vmem:[%s498] sm:$0xff]
          %v665 = vmul.f32 %v664, %v663
          %666 = vst.msk [vmem:[%s474] sm:$0xff] %vm554, %v665
        $region105: #{tpu_custom_call.1} parent=92 // pred_fallthru
          _
        %s667 = sand.u32 %s267, 1
        %s668 = scalar_lea.sflag [#allocation6], %s667
        %s669 = sand.u32 %s267, 1
        %s670 = smul.addr %s669, 8
        %s671 = scalar_lea.vmem [#allocation5], %s670
        // Predicated region
        $region106: #{tpu_custom_call.1} parent=92 // pred_check
          %p672 = pneg %p277
        $region107: #{tpu_custom_call.1} parent=92 // pred_check_branch
          %674 = sbr.rel (%p672) target = $region109
        $region108: #{tpu_custom_call.1} parent=92 // pred_region
          %676 = vsyncadd %s668, 0
          %s677 = smul.addr %s27, 8
          %s678 = scalar_lea.hbm %s9, %s677
          %s680 = sshll.u32 %s671, 4
          %s681 = int_to_ptr.vmem [resolvable:$true] %s680
          %s682 = sshll.u32 %s678, 4
          %s683 = int_to_ptr.hbm [resolvable:$true] %s682
          %685 = dma.vmem_to_hbm [thread:$0]  %s681, 128, %s683, %s668
        $region109: #{tpu_custom_call.1} parent=92 // pred_fallthru
          _
      $region93: #{tpu_custom_call.1} parent=5 // pred_fallthru
        _
      %p686 = scmp.le.s32.totalorder 2, %s18
      // Predicated region
      $region110: #{tpu_custom_call.1} parent=5 // pred_check
        %p687 = pneg %p686
      $region111: #{tpu_custom_call.1} parent=5 // pred_check_branch
        %689 = sbr.rel (%p687) target = $region113
      $region112: #{tpu_custom_call.1} parent=5 // pred_region
        %s690 = ssub.s32 %s18, 2
        // Predicated region
        $region114: #{tpu_custom_call.1} parent=112 // pred_check
          %p691 = pneg %p283
        $region115: #{tpu_custom_call.1} parent=112 // pred_check_branch
          %693 = sbr.rel (%p691) target = $region117
        $region116: #{tpu_custom_call.1} parent=112 // pred_region
          %s694 = sand.u32 %s268, 1
          %s695 = scalar_lea.sflag [#allocation6], %s694
          %s696 = sand.u32 %s268, 1
          %s697 = smul.addr %s696, 8
          %s698 = scalar_lea.vmem [#allocation5], %s697
          %700 = dma.done %s695, 128
        $region117: #{tpu_custom_call.1} parent=112 // pred_fallthru
          _
      $region113: #{tpu_custom_call.1} parent=5 // pred_fallthru
        _
    $region6: #{tpu_custom_call.1} parent=1 // loop_footer
      %s22 = sadd.s32 1, %s18
    $region7: #{tpu_custom_call.1} parent=1 // loop_footer_branch
      %17 = sbr.rel target = $region3
    $region8: #{tpu_custom_call.1} parent=1 // loop_exit
      _
    %701 = vsyncpa [#allocation6], 1
    %s702 = scalar_lea.sflag [#allocation6], 1
    %703 = vsyncpa %s702, 1

</llo_original>
